<compile_context>
chip_gen: v7x
topology: tpu7x:2x2x1
jax: 0.10.0
libtpu: 0.0.40
codegen_flags: <defaults>
</compile_context>

<pallas_src>
import functools
import math

import jax
import jax.numpy as jnp
from jax.experimental import pallas as pl
from jax.experimental.pallas import tpu as pltpu


# ----------------------------------------------------------------------------
# Shared numerics (used both inside kernels, on values, and in the reference).
# ----------------------------------------------------------------------------
def _layernorm(h, gamma, beta, eps=1e-5):
    mu = jnp.mean(h, axis=-1, keepdims=True)
    var = jnp.mean(jnp.square(h - mu), axis=-1, keepdims=True)
    return (h - mu) * jax.lax.rsqrt(var + eps) * gamma + beta


def make_positional_encoding(d_model: int, max_len: int = 5000) -> jnp.ndarray:
    """(max_len, d_model) sinusoidal table, matching the torch module init."""
    position = jnp.arange(0, max_len, dtype=jnp.float32)[:, None]            # (L, 1)
    div_term = jnp.exp(-jnp.arange(0, d_model, 2, dtype=jnp.float32)
                       * (math.log(10000.0) / d_model))                      # (ceil(D/2),)
    angles = position * div_term                                             # (L, ceil(D/2))
    enc = jnp.zeros((max_len, d_model), dtype=jnp.float32)
    enc = enc.at[:, 0::2].set(jnp.sin(angles))
    enc = enc.at[:, 1::2].set(jnp.cos(angles[:, : d_model // 2]))            # odd-D safe
    return enc


def _pick_row_tile(S: int, target_rows: int = 512) -> int:
    """Largest multiple-of-8 divisor of S, capped at target_rows (0 if none)."""
    best = 0
    t = 8
    while t <= min(S, target_rows):
        if S % t == 0:
            best = t
        t += 8
    return best


# ----------------------------------------------------------------------------
# Kernels
# ----------------------------------------------------------------------------
def _embed_pe_kernel(ids_ref, tbl_ref, pe_ref, o_ref):
    """Fused embedding gather + positional-encoding add for one row tile."""
    ids = ids_ref[...]                                   # (TR, 1) int32
    tr = ids.shape[0]
    vocab = tbl_ref.shape[0]
    # TODO(synk): for large vocab, replace the one-hot matmul with a
    # scalar-prefetch DMA gather of embedding rows.
    onehot = (jax.lax.broadcasted_iota(jnp.int32, (tr, vocab), 1) == ids
              ).astype(tbl_ref.dtype)
    emb = jnp.dot(onehot, tbl_ref[...], preferred_element_type=jnp.float32)
    o_ref[...] = (emb + pe_ref[...]).astype(o_ref.dtype)


def _block_kernel(num_heads, d_k,
                  x_ref, wqkv_ref, bqkv_ref, wo_ref, bo_ref,
                  g1_ref, be1_ref, w1_ref, b1_ref, w2_ref, b2_ref,
                  g2_ref, be2_ref, o_ref):
    """One full TransformerBlock (attention-over-heads + FFN + 2 LayerNorms)
    for a tile of token rows.  All ops are per-token, so row tiling is exact."""
    x = x_ref[...].astype(jnp.float32)                   # (TR, D)
    wqkv = wqkv_ref[...]                                 # (D, 3D)
    wo = wo_ref[...]                                     # (D, D)

    qkv = jnp.dot(x, wqkv, preferred_element_type=jnp.float32) + bqkv_ref[...]
    inv_sqrt_dk = 1.0 / math.sqrt(d_k)

    def head_cols(h, which):                             # which: 0=q, 1=k, 2=v
        start = h * 3 * d_k + which * d_k
        return qkv[:, start:start + d_k]                 # (TR, d_k)

    d_model = wo.shape[1]
    acc = jnp.zeros((x.shape[0], d_model), jnp.float32)
    for h in range(num_heads):
        q_h = head_cols(h, 0)
        # scores over the *head* axis (matches the reference module exactly)
        scores = [jnp.sum(q_h * head_cols(g, 1), axis=-1, keepdims=True) * inv_sqrt_dk
                  for g in range(num_heads)]             # num_heads x (TR, 1)
        m = scores[0]
        for g in range(1, num_heads):
            m = jnp.maximum(m, scores[g])
        exps = [jnp.exp(s - m) for s in scores]
        denom = exps[0]
        for g in range(1, num_heads):
            denom = denom + exps[g]
        inv_denom = 1.0 / denom
        ctx_h = (exps[0] * inv_denom) * head_cols(0, 2)
        for g in range(1, num_heads):
            ctx_h = ctx_h + (exps[g] * inv_denom) * head_cols(g, 2)
        # output projection split per head: avoids re-assembling the context
        acc = acc + jnp.dot(ctx_h, wo[h * d_k:(h + 1) * d_k, :],
                            preferred_element_type=jnp.float32)

    attn_out = acc + bo_ref[...]
    h1 = _layernorm(x + attn_out, g1_ref[...], be1_ref[...])
    hidden = jnp.maximum(
        jnp.dot(h1, w1_ref[...], preferred_element_type=jnp.float32) + b1_ref[...],
        0.0)
    ff = jnp.dot(hidden, w2_ref[...], preferred_element_type=jnp.float32) + b2_ref[...]
    o_ref[...] = _layernorm(h1 + ff, g2_ref[...], be2_ref[...]).astype(o_ref.dtype)


def _linear_kernel(x_ref, w_ref, b_ref, o_ref):
    o_ref[...] = (jnp.dot(x_ref[...], w_ref[...], preferred_element_type=jnp.float32)
                  + b_ref[...]).astype(o_ref.dtype)


# ----------------------------------------------------------------------------
# Wrapper (builds grids / BlockSpecs and chains the kernels)
# ----------------------------------------------------------------------------
def _resident(arr):
    """Full-extent VMEM block with constant index_map -> fetched once."""
    return pl.BlockSpec(arr.shape, lambda i: (0, 0))


def transformer_forward(ids, params, *, num_heads, target_rows=512):
    B, S = ids.shape
    tbl = params["embedding"]
    vocab, d_model = tbl.shape
    assert d_model % num_heads == 0
    d_k = d_model // num_heads
    N = B * S

    # Row tiling of the flattened (B*S, D) token stream.
    TR = _pick_row_tile(S, target_rows)
    if TR == 0:                      # S has no multiple-of-8 divisor: full blocks
        TR = N
        pe_rows = jnp.tile(params["pe"][:S], (B, 1))     # (N, D)
        pe_blocks = 1
    else:
        pe_rows = params["pe"][:S]                        # (S, D), reused per batch
        pe_blocks = S // TR
    grid = (N // TR,)
    parallel = pltpu.CompilerParams(dimension_semantics=("parallel",))

    row_spec = pl.BlockSpec((TR, d_model), lambda i: (i, 0))

    # --- fused embedding gather + positional encoding -----------------------
    ids2 = ids.reshape(N, 1).astype(jnp.int32)
    x = pl.pallas_call(
        _embed_pe_kernel,
        out_shape=jax.ShapeDtypeStruct((N, d_model), tbl.dtype),
        grid_spec=pltpu.PrefetchScalarGridSpec(
            num_scalar_prefetch=0,
            grid=grid,
            in_specs=[
                pl.BlockSpec((TR, 1), lambda i: (i, 0)),                    # token ids
                _resident(tbl),                                             # emb table
                pl.BlockSpec((TR, d_model),
                             lambda i, pb=pe_blocks: (i % pb, 0)),          # PE slice
            ],
            out_specs=row_spec,
        ),
        compiler_params=parallel,
    )(ids2, tbl, pe_rows)

    # --- transformer blocks (one fused kernel per layer) ---------------------
    blk = functools.partial(_block_kernel, num_heads, d_k)
    for lp in params["layers"]:
        consts = [lp["wqkv"], lp["bqkv"], lp["wo"], lp["bo"],
                  lp["g1"], lp["be1"], lp["w1"], lp["b1"],
                  lp["w2"], lp["b2"], lp["g2"], lp["be2"]]
        x = pl.pallas_call(
            blk,
            out_shape=jax.ShapeDtypeStruct((N, d_model), x.dtype),
            grid_spec=pltpu.PrefetchScalarGridSpec(
                num_scalar_prefetch=0,
                grid=grid,
                in_specs=[row_spec] + [_resident(c) for c in consts],
                out_specs=row_spec,
            ),
            compiler_params=parallel,
        )(x, *consts)

    # --- output projection to vocab ------------------------------------------
    w_out, b_out = params["w_out"], params["b_out"]
    logits = pl.pallas_call(
        _linear_kernel,
        out_shape=jax.ShapeDtypeStruct((N, vocab), x.dtype),
        grid_spec=pltpu.PrefetchScalarGridSpec(
            num_scalar_prefetch=0,
            grid=grid,
            in_specs=[row_spec, _resident(w_out), _resident(b_out)],
            out_specs=pl.BlockSpec((TR, vocab), lambda i: (i, 0)),
        ),
        compiler_params=parallel,
    )(x, w_out, b_out)

    return logits.reshape(B, S, vocab)


# ----------------------------------------------------------------------------
# Parameter init (deterministic, weights stored as (in, out); biases (1, out))
# ----------------------------------------------------------------------------
def init_transformer_params(key, vocab_size, d_model, num_heads, num_layers,
                            dim_feedforward, max_len):
    k_emb, k_out, k_bout, k_layers = jax.random.split(key, 4)
    params = {
        "embedding": 0.02 * jax.random.normal(k_emb, (vocab_size, d_model), jnp.float32),
        "pe": make_positional_encoding(d_model, max_len),
        "w_out": 0.1 * jax.random.normal(k_out, (d_model, vocab_size), jnp.float32),
        "b_out": 0.01 * jax.random.normal(k_bout, (1, vocab_size), jnp.float32),
        "layers": [],
    }
    for lk in jax.random.split(k_layers, num_layers):
        k = jax.random.split(lk, 8)
        params["layers"].append(dict(
            wqkv=0.1 * jax.random.normal(k[0], (d_model, 3 * d_model), jnp.float32),
            bqkv=0.01 * jax.random.normal(k[1], (1, 3 * d_model), jnp.float32),
            wo=0.1 * jax.random.normal(k[2], (d_model, d_model), jnp.float32),
            bo=0.01 * jax.random.normal(k[3], (1, d_model), jnp.float32),
            g1=jnp.ones((1, d_model), jnp.float32),
            be1=jnp.zeros((1, d_model), jnp.float32),
            w1=0.1 * jax.random.normal(k[4], (d_model, dim_feedforward), jnp.float32),
            b1=0.01 * jax.random.normal(k[5], (1, dim_feedforward), jnp.float32),
            w2=0.1 * jax.random.normal(k[6], (dim_feedforward, d_model), jnp.float32),
            b2=0.01 * jax.random.normal(k[7], (1, d_model), jnp.float32),
            g2=jnp.ones((1, d_model), jnp.float32),
            be2=jnp.zeros((1, d_model), jnp.float32),
        ))
    return params


# ----------------------------------------------------------------------------
# Pure-JAX reference (mirrors the PyTorch module literally, incl. the
# head-wise attention of the reference code)
# ----------------------------------------------------------------------------
def reference_forward(ids, params, num_heads):
    B, S = ids.shape
    tbl = params["embedding"]
    d_model = tbl.shape[1]
    d_k = d_model // num_heads
    x = tbl[ids] + params["pe"][:S][None]
    for lp in params["layers"]:
        qkv = x @ lp["wqkv"] + lp["bqkv"][0]
        qkv = qkv.reshape(B, S, num_heads, 3 * d_k)
        q, k, v = qkv[..., :d_k], qkv[..., d_k:2 * d_k], qkv[..., 2 * d_k:]
        scores = jnp.einsum("bshd,bsgd->bshg", q, k) / math.sqrt(d_k)
        attn = jax.nn.softmax(scores, axis=-1)
        ctx = jnp.einsum("bshg,bsgd->bshd", attn, v).reshape(B, S, d_model)
        attn_out = ctx @ lp["wo"] + lp["bo"][0]
        x = _layernorm(x + attn_out, lp["g1"][0], lp["be1"][0])
        ff = jnp.maximum(x @ lp["w1"] + lp["b1"][0], 0.0) @ lp["w2"] + lp["b2"][0]
        x = _layernorm(x + ff, lp["g2"][0], lp["be2"][0])
    return x @ params["w_out"] + params["b_out"][0]


if __name__ == "__main__":
    vocab_size, d_model, num_heads = 50, 32, 4
    num_layers, dim_feedforward, max_len = 2, 64, 64
    B, S = 2, 8

    key = jax.random.PRNGKey(0)
    k_params, k_ids = jax.random.split(key)
    params = init_transformer_params(k_params, vocab_size, d_model, num_heads,
                                     num_layers, dim_feedforward, max_len)
    ids = jax.random.randint(k_ids, (B, S), 0, vocab_size, dtype=jnp.int32)

    out = transformer_forward(ids, params, num_heads=num_heads)
    out = jax.block_until_ready(out)

    ref = reference_forward(ids, params, num_heads)
    assert out.shape == (B, S, vocab_size)
    assert jnp.allclose(out, ref, atol=1e-3, rtol=1e-3), (
        "mismatch vs reference, max abs diff = "
        f"{float(jnp.max(jnp.abs(out - ref)))}")

    print("KERNEL_OK")
</pallas_src>

<mosaic_0001>
module attributes {stable_mosaic.version = 11 : i64} {
  func.func @_embed_pe_kernel(%arg0: i32, %arg1: memref<8x1xi32, #tpu.memory_space<vmem>>, %arg2: memref<50x32xf32, #tpu.memory_space<vmem>>, %arg3: memref<8x32xf32, #tpu.memory_space<vmem>>, %arg4: memref<8x32xf32, #tpu.memory_space<vmem>>) attributes {dimension_semantics = [#tpu.dimension_semantics<parallel>], iteration_bounds = array<i64: 2>, scalar_prefetch = 0 : i64, scratch_operands = 0 : i64, tpu.core_type = #tpu.core_type<tc>, window_params = [{transform_indices = @transform_0, window_bounds = array<i64: 8, 1>}, {pipeline_mode = #tpu.pipeline_mode<synchronous>, transform_indices = @transform_1, window_bounds = array<i64: 50, 32>}, {transform_indices = @transform_2, window_bounds = array<i64: 8, 32>}, {transform_indices = @transform_3, window_bounds = array<i64: 8, 32>}]} {
    %c0 = arith.constant 0 : index
    %c0_0 = arith.constant 0 : index
    %0 = vector.load %arg1[%c0, %c0_0] : memref<8x1xi32, #tpu.memory_space<vmem>>, vector<8x1xi32>
    %1 = tpu.iota {dimensions = array<i32: 1>} : vector<8x50xi32>
    %2 = vector.broadcast %0 : vector<8x1xi32> to vector<8x50xi32>
    %3 = arith.cmpi eq, %1, %2 : vector<8x50xi32>
    %4 = arith.extui %3 : vector<8x50xi1> to vector<8x50xi32>
    %5 = arith.sitofp %4 : vector<8x50xi32> to vector<8x50xf32>
    %c0_1 = arith.constant 0 : index
    %c0_2 = arith.constant 0 : index
    %6 = vector.load %arg2[%c0_1, %c0_2] : memref<50x32xf32, #tpu.memory_space<vmem>>, vector<50x32xf32>
    %cst = arith.constant dense<0.000000e+00> : vector<8x32xf32>
    %7 = tpu.matmul %5, %6, %cst {dimension_numbers = #tpu.dot_dimension_numbers<[1], [0], [0], [1], [0, 0, 1, 1], [], []>} : vector<8x50xf32>, vector<50x32xf32>, vector<8x32xf32> -> vector<8x32xf32>
    %c0_3 = arith.constant 0 : index
    %c0_4 = arith.constant 0 : index
    %8 = vector.load %arg3[%c0_3, %c0_4] : memref<8x32xf32, #tpu.memory_space<vmem>>, vector<8x32xf32>
    %9 = arith.addf %7, %8 : vector<8x32xf32>
    %c0_5 = arith.constant 0 : index
    %c0_6 = arith.constant 0 : index
    %10 = vector.load %arg4[%c0_5, %c0_6] : memref<8x32xf32, #tpu.memory_space<vmem>>, vector<8x32xf32>
    tpu.vector_store %arg4[%c0_5, %c0_6], %9 {strides = array<i32>} : memref<8x32xf32, #tpu.memory_space<vmem>>, vector<8x32xf32>,
    return
  }
  func.func @transform_0(%arg0: i32) -> (i32, i32) {
    %c0_i32 = arith.constant 0 : i32
    %c0_i32_0 = arith.constant 0 : i32
    return %arg0, %c0_i32 : i32, i32
  }
  func.func @transform_1(%arg0: i32) -> (i32, i32) {
    %c0_i32 = arith.constant 0 : i32
    %c0_i32_0 = arith.constant 0 : i32
    %c0_i32_1 = arith.constant 0 : i32
    return %c0_i32, %c0_i32_0 : i32, i32
  }
  func.func @transform_2(%arg0: i32) -> (i32, i32) {
    %c1_i32 = arith.constant 1 : i32
    %c0_i32 = arith.constant 0 : i32
    %0 = arith.cmpi eq, %c1_i32, %c0_i32 : i32
    %c1_i32_0 = arith.constant 1 : i32
    %1 = arith.select %0, %c1_i32_0, %c1_i32 : i32
    %2 = arith.remsi %arg0, %1 : i32
    %c0_i32_1 = arith.constant 0 : i32
    %3 = arith.cmpi ne, %2, %c0_i32_1 : i32
    %c0_i32_2 = arith.constant 0 : i32
    %4 = arith.cmpi slt, %2, %c0_i32_2 : i32
    %c0_i32_3 = arith.constant 0 : i32
    %5 = arith.cmpi slt, %1, %c0_i32_3 : i32
    %6 = arith.xori %4, %5 : i1
    %7 = arith.andi %6, %3 : i1
    %8 = arith.addi %2, %1 : i32
    %9 = arith.select %7, %8, %2 : i32
    %c0_i32_4 = arith.constant 0 : i32
    %c0_i32_5 = arith.constant 0 : i32
    return %9, %c0_i32_4 : i32, i32
  }
  func.func @transform_3(%arg0: i32) -> (i32, i32) {
    %c0_i32 = arith.constant 0 : i32
    %c0_i32_0 = arith.constant 0 : i32
    return %arg0, %c0_i32 : i32, i32
  }
}

</mosaic_0001>

<llo_original>
// kernel: tpu_custom_call.1
$region0: #{tpu_custom_call.1}
  #allocation0 [shape = 'u32[]', space=smem, size = 0x4, offset = 0x4, fixed_abs, tag = 'smem constant byte address 0x4 - core index']
  #allocation1 [shape = 'u32[144,128]{1,0:T(1,128)}', space=vmem, size = 0x12000, scoped, tag = 'internal scratch']
  %s0 = inlined_call_operand.vmem [shape: s32[16,1], index: 0, kind: input, shape index: {}]
  %s1 = inlined_call_operand.vmem [shape: f32[50,32], index: 1, kind: input, shape index: {}]
  %s2 = inlined_call_operand.vmem [shape: f32[8,32], index: 2, kind: input, shape index: {}]
  %s3 = inlined_call_operand.hbm [shape: f32[16,32], index: 3, kind: output, shape index: {}]
  %s4 = sld [smem:[#allocation0]]
  $region45: #{tpu_custom_call.1} parent=0
    _
  %s6 = ssub.s32 1, %s4
  %s7 = scalar_select 0, %s6, %s4
  $region1: #{tpu_custom_call.1} parent=0
    #allocation2 [shape = 'u8[8192]{0}', space=vmem, size = 0x2000, scoped, tag = 'output window, operand 0']
    #allocation3 [shape = 's32[2]{0}', space=sflag, size = 0x8, scoped, tag = 'scoped memory for tpu_custom_call.1']
    %8 = vsyncpa [#allocation3], 0
    %s9 = scalar_lea.sflag [#allocation3], 1
    %10 = vsyncpa %s9, 0
    loop: start=0, step=1, limit=4
    $region2: #{tpu_custom_call.1} parent=1 // loop_pre_header
      _
    $region3: #{tpu_custom_call.1} parent=1 // loop_header
      %s12 = sphi 0, %s16
      %p13 = scmp.ge.s32.totalorder %s12, 4
      %s22 = sphi 0, %s24
      %s25 = sphi 0, %s22
      %s26 = sphi 0, %s25
      %s42 = sphi 0, %s26
      %s46 = sphi 0, %s46
      %s48 = sphi 0, %s46
      %s49 = sphi 0, %s48
      %s63 = sphi 0, %s49
      %s67 = sphi 0, %s67
      %s69 = sphi 0, %s67
      %s70 = sphi 0, %s69
      %s84 = sphi 0, %s70
      %s90 = sphi 0, %s92
      %s93 = sphi 0, %s90
      %s94 = sphi 0, %s93
      %s110 = sphi 0, %s94
    $region4: #{tpu_custom_call.1} parent=1 // loop_header_branch
      %15 = sbr.rel (%p13) target = $region8
    $region5: #{tpu_custom_call.1} parent=1 // loop_body
      %s17 = ssub.s32 %s12, 1
      %s18 = ssub.s32 %s12, 2
      %s19 = sadd.s32 %s12, 1
      %s20 = ssub.s32 %s12, %s19
      %p21 = scmp.eq.s32.totalorder %s20, 0
      %s23 = sadd.s32 %s22, 1
      %s24 = scalar_select %p21, %s22, %s23
      %p27 = pneg %p21
      %p28 = scmp.eq.s32.totalorder %s12, 1
      %p29 = por %p27, %p28
      %p30 = scmp.ne.s32.totalorder %s22, %s25
      %p31 = scmp.eq.s32.totalorder %s12, 0
      %p32 = por %p30, %p31
      %p33 = scmp.ne.s32.totalorder %s22, %s25
      %p34 = scmp.eq.s32.totalorder %s17, 1
      %p35 = por %p33, %p34
      %p36 = scmp.ne.s32.totalorder %s25, %s26
      %p37 = scmp.eq.s32.totalorder %s17, 0
      %p38 = por %p36, %p37
      %p39 = scmp.ne.s32.totalorder %s25, %s26
      %p40 = scmp.eq.s32.totalorder %s18, 1
      %p41 = por %p39, %p40
      %p43 = scmp.ne.s32.totalorder %s26, %s42
      %p44 = scmp.eq.s32.totalorder %s18, 0
      %p45 = por %p43, %p44
      %s47 = sadd.s32 %s46, 1
      %p50 = scmp.eq.s32.totalorder %s12, 1
      %p51 = scmp.ne.s32.totalorder %s46, %s48
      %p52 = scmp.eq.s32.totalorder %s12, 0
      %p53 = por %p51, %p52
      %p54 = scmp.ne.s32.totalorder %s46, %s48
      %p55 = scmp.eq.s32.totalorder %s17, 1
      %p56 = por %p54, %p55
      %p57 = scmp.ne.s32.totalorder %s48, %s49
      %p58 = scmp.eq.s32.totalorder %s17, 0
      %p59 = por %p57, %p58
      %p60 = scmp.ne.s32.totalorder %s48, %s49
      %p61 = scmp.eq.s32.totalorder %s18, 1
      %p62 = por %p60, %p61
      %p64 = scmp.ne.s32.totalorder %s49, %s63
      %p65 = scmp.eq.s32.totalorder %s18, 0
      %p66 = por %p64, %p65
      %s68 = sadd.s32 %s67, 1
      %p71 = scmp.eq.s32.totalorder %s12, 1
      %p72 = scmp.ne.s32.totalorder %s67, %s69
      %p73 = scmp.eq.s32.totalorder %s12, 0
      %p74 = por %p72, %p73
      %p75 = scmp.ne.s32.totalorder %s67, %s69
      %p76 = scmp.eq.s32.totalorder %s17, 1
      %p77 = por %p75, %p76
      %p78 = scmp.ne.s32.totalorder %s69, %s70
      %p79 = scmp.eq.s32.totalorder %s17, 0
      %p80 = por %p78, %p79
      %p81 = scmp.ne.s32.totalorder %s69, %s70
      %p82 = scmp.eq.s32.totalorder %s18, 1
      %p83 = por %p81, %p82
      %p85 = scmp.ne.s32.totalorder %s70, %s84
      %p86 = scmp.eq.s32.totalorder %s18, 0
      %p87 = por %p85, %p86
      %s88 = ssub.s32 %s12, %s19
      %p89 = scmp.eq.s32.totalorder %s88, 0
      %s91 = sadd.s32 %s90, 1
      %s92 = scalar_select %p89, %s90, %s91
      %p95 = pneg %p89
      %p96 = scmp.eq.s32.totalorder %s12, 1
      %p97 = por %p95, %p96
      %p98 = scmp.ne.s32.totalorder %s90, %s93
      %p99 = scmp.eq.s32.totalorder %s12, 0
      %p100 = por %p98, %p99
      %p101 = scmp.ne.s32.totalorder %s90, %s93
      %p102 = scmp.eq.s32.totalorder %s17, 1
      %p103 = por %p101, %p102
      %p104 = scmp.ne.s32.totalorder %s93, %s94
      %p105 = scmp.eq.s32.totalorder %s17, 0
      %p106 = por %p104, %p105
      %p107 = scmp.ne.s32.totalorder %s93, %s94
      %p108 = scmp.eq.s32.totalorder %s18, 1
      %p109 = por %p107, %p108
      %p111 = scmp.ne.s32.totalorder %s94, %s110
      %p112 = scmp.eq.s32.totalorder %s18, 0
      %p113 = por %p111, %p112
      %p114 = scmp.le.s32.totalorder 1, %s12
      %p115 = scmp.lt.s32.totalorder %s12, 3
      %p116 = pnand %p114, %p115
      %p117 = pneg %p116
      // Predicated region
      $region9: #{tpu_custom_call.1} parent=5 // pred_check
        _
      $region10: #{tpu_custom_call.1} parent=5 // pred_check_branch
        %119 = sbr.rel (%p116) target = $region12
      $region11: #{tpu_custom_call.1} parent=5 // pred_region
        %s120 = ssub.s32 %s12, 1
        // Predicated region
        $region13: #{tpu_custom_call.1} parent=11 // pred_check
          %p121 = pneg %p59
        $region14: #{tpu_custom_call.1} parent=11 // pred_check_branch
          %123 = sbr.rel (%p121) target = $region16
        $region15: #{tpu_custom_call.1} parent=11 // pred_region
          _
        $region16: #{tpu_custom_call.1} parent=11 // pred_fallthru
          _
        // Predicated region
        $region17: #{tpu_custom_call.1} parent=11 // pred_check
          %p124 = pneg %p80
        $region18: #{tpu_custom_call.1} parent=11 // pred_check_branch
          %126 = sbr.rel (%p124) target = $region20
        $region19: #{tpu_custom_call.1} parent=11 // pred_region
          _
        $region20: #{tpu_custom_call.1} parent=11 // pred_fallthru
          _
      $region12: #{tpu_custom_call.1} parent=5 // pred_fallthru
        _
      %p127 = scmp.lt.s32.totalorder %s12, 2
      // Predicated region
      $region21: #{tpu_custom_call.1} parent=5 // pred_check
        %p128 = pneg %p127
      $region22: #{tpu_custom_call.1} parent=5 // pred_check_branch
        %130 = sbr.rel (%p128) target = $region24
      $region23: #{tpu_custom_call.1} parent=5 // pred_region
        // Predicated region
        $region25: #{tpu_custom_call.1} parent=23 // pred_check
          %p131 = pneg %p32
        $region26: #{tpu_custom_call.1} parent=23 // pred_check_branch
          %133 = sbr.rel (%p131) target = $region28
        $region27: #{tpu_custom_call.1} parent=23 // pred_region
          %p134 = scmp.lt.s32.totalorder %s12, 1
          %s135 = scalar_select %p134, %s12, 1
          %s136 = smul.addr %s135, 8
          %s137 = scalar_lea.vmem %s0, %s136
        $region28: #{tpu_custom_call.1} parent=23 // pred_fallthru
          _
      $region24: #{tpu_custom_call.1} parent=5 // pred_fallthru
        _
      %p138 = scmp.le.s32.totalorder 1, %s12
      %p139 = scmp.lt.s32.totalorder %s12, 3
      %p140 = pnand %p138, %p139
      %p141 = pneg %p140
      // Predicated region
      $region29: #{tpu_custom_call.1} parent=5 // pred_check
        _
      $region30: #{tpu_custom_call.1} parent=5 // pred_check_branch
        %143 = sbr.rel (%p140) target = $region32
      $region31: #{tpu_custom_call.1} parent=5 // pred_region
        %s144 = ssub.s32 %s12, 1
        %p145 = scmp.lt.s32.totalorder %s17, 1
        %s146 = scalar_select %p145, %s17, 1
        %s147 = smul.addr %s146, 8
        %s148 = scalar_lea.vmem %s0, %s147
        %p149 = pneg %p38
        %p150 = pneg %p35
        %p151 = pneg %p59
        %p152 = pneg %p56
        %p153 = pneg %p80
        %p154 = pneg %p77
        %p155 = pneg %p106
        %p156 = pneg %p103
        %s157 = sand.u32 %s93, 1
        %s158 = scalar_lea.sflag [#allocation3], %s157
        %s159 = sand.u32 %s93, 1
        %s160 = smul.addr %s159, 8
        %s161 = scalar_lea.vmem [#allocation2], %s160
        %p162 = scmp.lt.s32.totalorder %s17, 1
        %s163 = scalar_select %p162, %s17, 1
        %s164 = smul.addr %s163, 8
        %s165 = scalar_lea.vmem %s0, %s164
        %v166 = vld [vmem:[%s165] sm:$0xff]
        %v167 = vlaneseq
        %v168 = vand.u32 %v167, 127
        %169 = vset.pattern.permute.xlu0 0
        %170 = vperm.xlu0 %169, %v166
        %v171 = vpop.permute.xlu0 %170
        %vm172 = vcmp.eq.s32.totalorder %v168, %v171
        %v173 = vsel %vm172, 1, 0
        %v174 = vcvt.s32.f32 %v173
        %v175 = vld [vmem:[%s1] sm:$0xff]
        %v176 = vld [vmem:[%s1 + $0x8] sm:$0xff]
        %v177 = vld [vmem:[%s1 + $0x10] sm:$0xff]
        %v178 = vld [vmem:[%s1 + $0x18] sm:$0xff]
        %v179 = vld [vmem:[%s1 + $0x20] sm:$0xff]
        %v180 = vld [vmem:[%s1 + $0x28] sm:$0xff]
        %v181 = vld [vmem:[%s1 + $0x30] sm:$0x3]
        %v182 = vld [vmem:[%s2] sm:$0xff]
        %vm183 = vcmask 408576
        %v185 = vsel %vm183, %v174, 0
        %vm187 = vcmask 1041408
        %v189 = vsel %vm187, %v181, 0
        %191 = vmatprep.subr.mxu0 0.0
        %192 = vmatpush1.msra.mxu0 %v175
        %193 = vmatprep.subr.mxu0 0.0
        %194 = vmatpush1.msra.mxu0 %v176
        %195 = vmatprep.subr.mxu0 0.0
        %196 = vmatpush1.msra.mxu0 %v177
        %197 = vmatprep.subr.mxu0 0.0
        %198 = vmatpush1.msra.mxu0 %v178
        %199 = vmatprep.subr.mxu0 0.0
        %200 = vmatpush1.msra.mxu0 %v179
        %201 = vmatprep.subr.mxu0 0.0
        %202 = vmatpush1.msra.mxu0 %v180
        %203 = vmatprep.subr.mxu0 0.0
        %204 = vmatpush1.msra.mxu0 %v189
        %205 = vmatprep.subr.mxu0 0.0
        %206 = vmatpush1.msra.mxu0 0.0
        %207 = vmatprep.subr.mxu0 0.0
        %208 = vmatpush1.msra.mxu0 0.0
        %209 = vmatprep.subr.mxu0 0.0
        %210 = vmatpush1.msra.mxu0 0.0
        %211 = vmatprep.subr.mxu0 0.0
        %212 = vmatpush1.msra.mxu0 0.0
        %213 = vmatprep.subr.mxu0 0.0
        %214 = vmatpush1.msra.mxu0 0.0
        %215 = vmatprep.subr.mxu0 0.0
        %216 = vmatpush1.msra.mxu0 0.0
        %217 = vmatprep.subr.mxu0 0.0
        %218 = vmatpush1.msra.mxu0 0.0
        %219 = vmatprep.subr.mxu0 0.0
        %220 = vmatpush1.msra.mxu0 0.0
        %221 = vmatprep.subr.mxu0 0.0
        %222 = vmatpush1.msra.mxu0 0.0
        %223 = vmatprep.subr.mxu0 0.0
        %224 = vmatpush1.msra.mxu0 0.0
        %225 = vmatprep.subr.mxu0 0.0
        %226 = vmatpush1.msra.mxu0 0.0
        %227 = vmatprep.subr.mxu0 0.0
        %228 = vmatpush1.msra.mxu0 0.0
        %229 = vmatprep.subr.mxu0 0.0
        %230 = vmatpush1.msra.mxu0 0.0
        %231 = vmatprep.subr.mxu0 0.0
        %232 = vmatpush1.msra.mxu0 0.0
        %233 = vmatprep.subr.mxu0 0.0
        %234 = vmatpush1.msra.mxu0 0.0
        %235 = vmatprep.subr.mxu0 0.0
        %236 = vmatpush1.msra.mxu0 0.0
        %237 = vmatprep.subr.mxu0 0.0
        %238 = vmatpush1.msra.mxu0 0.0
        %239 = vmatprep.subr.mxu0 0.0
        %240 = vmatpush1.msra.mxu0 0.0
        %241 = vmatprep.subr.mxu0 0.0
        %242 = vmatpush1.msra.mxu0 0.0
        %243 = vmatprep.subr.mxu0 0.0
        %244 = vmatpush1.msra.mxu0 0.0
        %245 = vmatprep.subr.mxu0 0.0
        %246 = vmatpush1.msra.mxu0 0.0
        %247 = vmatprep.subr.mxu0 0.0
        %248 = vmatpush1.msra.mxu0 0.0
        %249 = vmatprep.subr.mxu0 0.0
        %250 = vmatpush1.msra.mxu0 0.0
        %251 = vmatprep.subr.mxu0 0.0
        %252 = vmatpush1.msra.mxu0 0.0
        %253 = vmatprep.subr.mxu0 0.0
        %254 = vmatpush1.msra.mxu0 0.0
        %255 = vmatprep.mubr.f32.mxu0 0.0
        %256 = vmatmul.mubr.f32.gmra.mrb[0].mxu0 %v185
        %v257 = vpop.f32.mrb[0].mxu0
        %v258 = vadd.f32 %v182, %v257
        %v259 = vpop.f32.mrb[0].mxu0
        %260 = vdwg.mxu0
        %vm261 = vcmask 261120
        %262 = vst.msk [vmem:[%s161] sm:$0xff] %vm261, %v258
        %s263 = sand.u32 %s93, 1
        %s264 = scalar_lea.sflag [#allocation3], %s263
        %s265 = sand.u32 %s93, 1
        %s266 = smul.addr %s265, 8
        %s267 = scalar_lea.vmem [#allocation2], %s266
        // Predicated region
        $region33: #{tpu_custom_call.1} parent=31 // pred_check
          %p268 = pneg %p103
        $region34: #{tpu_custom_call.1} parent=31 // pred_check_branch
          %270 = sbr.rel (%p268) target = $region36
        $region35: #{tpu_custom_call.1} parent=31 // pred_region
          %s272 = ssub.s32 128, 128
          %273 = vsyncadd %s264, %s272
          %s274 = smul.addr %s17, 128
          %s275 = scalar_lea.hbm %s3, %s274
          %s277 = sshll.u32 %s267, 4
          %s278 = int_to_ptr.vmem [resolvable:$true] %s277
          %280 = dma.vmem_to_hbm [thread:$0]  %s278, 128, %s275, %s264
        $region36: #{tpu_custom_call.1} parent=31 // pred_fallthru
          _
      $region32: #{tpu_custom_call.1} parent=5 // pred_fallthru
        _
      %p281 = scmp.le.s32.totalorder 2, %s12
      // Predicated region
      $region37: #{tpu_custom_call.1} parent=5 // pred_check
        %p282 = pneg %p281
      $region38: #{tpu_custom_call.1} parent=5 // pred_check_branch
        %284 = sbr.rel (%p282) target = $region40
      $region39: #{tpu_custom_call.1} parent=5 // pred_region
        %s285 = ssub.s32 %s12, 2
        // Predicated region
        $region41: #{tpu_custom_call.1} parent=39 // pred_check
          %p286 = pneg %p109
        $region42: #{tpu_custom_call.1} parent=39 // pred_check_branch
          %288 = sbr.rel (%p286) target = $region44
        $region43: #{tpu_custom_call.1} parent=39 // pred_region
          %s289 = sand.u32 %s94, 1
          %s290 = scalar_lea.sflag [#allocation3], %s289
          %s291 = sand.u32 %s94, 1
          %s292 = smul.addr %s291, 8
          %s293 = scalar_lea.vmem [#allocation2], %s292
          %294 = dma.done %s290, 128
        $region44: #{tpu_custom_call.1} parent=39 // pred_fallthru
          _
      $region40: #{tpu_custom_call.1} parent=5 // pred_fallthru
        _
    $region6: #{tpu_custom_call.1} parent=1 // loop_footer
      %s16 = sadd.s32 1, %s12
    $region7: #{tpu_custom_call.1} parent=1 // loop_footer_branch
      %11 = sbr.rel target = $region3
    $region8: #{tpu_custom_call.1} parent=1 // loop_exit
      _
    %295 = vsyncpa [#allocation3], 1
    %s296 = scalar_lea.sflag [#allocation3], 1
    %297 = vsyncpa %s296, 1

</llo_original>
